<compile_context>
chip_gen: v7x
topology: tpu7x:2x2x1
jax: 0.10.0
libtpu: 0.0.40
codegen_flags: <defaults>
</compile_context>

<pallas_src>
import functools
import math

import jax
import jax.numpy as jnp
from jax.experimental import pallas as pl
from jax.experimental.pallas import tpu as pltpu


def _round_up(x, m):
    return ((x + m - 1) // m) * m


def _wn_classifier_kernel(gamma_ref, x_ref, w_ref, o_ref, scale_ref, *, bf16_matmul):
    # gamma_ref: SMEM (1,)   f32 scalar
    # x_ref:     VMEM (tm, D)  feature tile
    # w_ref:     VMEM (tn, D)  raw classifier-weight tile (full D)
    # o_ref:     VMEM (tm, tn) logits tile
    # scale_ref: VMEM (1, tn)  per-class scale gamma/||w_c||, carried across the
    #            inner (row) grid axis.
    #
    # NOTE: the scale-scratch carry relies on the grid order being
    # (class tiles OUTER, row tiles INNER) with the inner axis marked
    # "arbitrary"; reordering axes or marking the inner axis "parallel" would
    # leave stale scales on a second core.

    @pl.when(pl.program_id(1) == 0)
    def _():
        w32 = w_ref[...].astype(jnp.float32)
        # Row-wise squared L2 norms, produced directly in (1, tn) "column"
        # orientation by contracting an 8-row ones block against w*w on the
        # MXU.  Avoids a (tn,1)->(1,tn) cross-lane transpose and is amortized
        # over all row tiles of this class tile.
        ones = jnp.ones((8, w32.shape[1]), jnp.float32)
        sq = jax.lax.dot_general(
            ones, w32 * w32,
            dimension_numbers=(((1,), (1,)), ((), ())),
            preferred_element_type=jnp.float32,
        )                                                   # (8, tn), rows equal
        # gamma / max(||w||, 1e-12) == gamma * rsqrt(max(||w||^2, 1e-24))
        scale_ref[...] = gamma_ref[0] * jax.lax.rsqrt(
            jnp.maximum(sq[0:1, :], 1e-24))

    x = x_ref[...]
    w = w_ref[...]
    if bf16_matmul:
        # Feed the MXU its native dtype; accumulation stays f32.
        x = x.astype(jnp.bfloat16)
        w = w.astype(jnp.bfloat16)

    # (tm, D) x (tn, D)^T without materializing a transpose: contract dim 1 of
    # both operands; the MXU consumes the RHS-transposed form natively.
    acc = jax.lax.dot_general(
        x, w,
        dimension_numbers=(((1,), (1,)), ((), ())),
        preferred_element_type=jnp.float32,
    )                                                       # (tm, tn) f32

    # x @ (s*w)^T == (x @ w^T) * s : apply the per-class column scale to the
    # small output tile (VPU work that hides under the MXU).
    o_ref[...] = (acc * scale_ref[...]).astype(o_ref.dtype)


def weight_norm_classifier(cls_feat, weight, gamma, *, tm=256, tn=512,
                           use_bf16_matmul=False):
    """cls_feat: (N, D) f32, weight: (C, D) f32, gamma: (1,) f32 -> (N, C) f32."""
    N, D = cls_feat.shape
    C, D2 = weight.shape
    assert D == D2

    # Shrink tiles for small problems while keeping TPU layout constraints
    # (sublane multiple of 8, lane multiple of 128).
    tm = _round_up(min(tm, _round_up(N, 8)), 8)
    tn = _round_up(min(tn, _round_up(C, 128)), 128)

    # v7x has 2 TensorCores: make sure the "parallel" class-tile axis has at
    # least 2 tiles whenever C allows, so one core never idles.
    full_c = _round_up(C, 128)
    if full_c // tn < 2 and full_c >= 256:
        tn = max(128, ((full_c // 2) // 128) * 128)

    # Rough resident-VMEM estimate: double-buffered x/w input tiles,
    # double-buffered output tile, scale scratch, plus transient temporaries
    # (w*w once per class tile, bf16 operand casts).  Shrink tiles if this
    # would blow the per-generation scoped VMEM defaults.
    def _vmem_bytes(tm_, tn_):
        return (4 * (2 * tm_ * D + 2 * tn_ * D + 2 * tm_ * tn_ + tn_)
                + 4 * tn_ * D + 2 * (tm_ + tn_) * D)

    budget = 24 * 1024 * 1024
    while _vmem_bytes(tm, tn) > budget and (tm > 128 or tn > 128):
        if tn >= tm and tn > 128:
            tn = max(128, ((tn // 2) // 128) * 128)
        else:
            tm = max(128, _round_up(tm // 2, 8))
    # TODO(synk): for very large input_dim, add a K (contraction) grid axis
    # with an f32 accumulator instead of carrying full-D blocks.

    Np = _round_up(N, tm)
    Cp = _round_up(C, tn)

    # Pad only when the shapes are ragged (avoids extra HBM passes otherwise).
    x = cls_feat if Np == N else jnp.pad(cls_feat, ((0, Np - N), (0, 0)))
    w = weight if Cp == C else jnp.pad(weight, ((0, Cp - C), (0, 0)))
    gamma = jnp.asarray(gamma, jnp.float32).reshape((1,))

    # Class tiles outer (megacore-parallel), row tiles inner ("arbitrary":
    # the per-class scale scratch is carried across this axis).
    grid = (Cp // tn, Np // tm)

    vmem_limit = int(min(64 * 1024 * 1024,
                         max(32 * 1024 * 1024, 2 * _vmem_bytes(tm, tn))))

    kernel = functools.partial(_wn_classifier_kernel, bf16_matmul=use_bf16_matmul)

    out = pl.pallas_call(
        kernel,
        out_shape=jax.ShapeDtypeStruct((Np, Cp), jnp.float32),
        grid_spec=pltpu.PrefetchScalarGridSpec(
            num_scalar_prefetch=0,
            grid=grid,
            in_specs=[
                pl.BlockSpec(memory_space=pltpu.MemorySpace.SMEM),   # gamma (1,)
                pl.BlockSpec((tm, D), lambda j, i: (i, 0)),          # cls_feat
                pl.BlockSpec((tn, D), lambda j, i: (j, 0)),          # weight
            ],
            out_specs=pl.BlockSpec((tm, tn), lambda j, i: (i, j)),
            scratch_shapes=[pltpu.VMEM((1, tn), jnp.float32)],       # per-class scale
        ),
        compiler_params=pltpu.CompilerParams(
            dimension_semantics=("parallel", "arbitrary"),
            vmem_limit_bytes=vmem_limit,
        ),
    )(gamma, x, w)

    if Np != N or Cp != C:
        out = out[:N, :C]
    return out


def _reference(cls_feat, weight, gamma):
    # F.normalize(dim=1, eps=1e-12) semantics in f32.
    norm = jnp.maximum(jnp.sqrt(jnp.sum(weight * weight, axis=1, keepdims=True)), 1e-12)
    return cls_feat @ (gamma[0] * (weight / norm)).T


if __name__ == "__main__":
    # Small shapes consistent with the module (input_dim -> D, num_class -> C).
    N, D, C = 256, 256, 512
    gamma_init = 1.0

    key = jax.random.PRNGKey(0)
    k_feat, k_w = jax.random.split(key)

    # Deterministic parameter init matching reset_parameters():
    # weight ~ U(-stdv, stdv), stdv = 1/sqrt(input_dim)
    stdv = 1.0 / math.sqrt(D)
    weight = jax.random.uniform(
        k_w, (C, D), minval=-stdv, maxval=stdv, dtype=jnp.float32
    )
    gamma = jnp.array([gamma_init], dtype=jnp.float32)
    cls_feat = jax.random.normal(k_feat, (N, D), dtype=jnp.float32)

    # f32 path (module semantics).
    out = jax.block_until_ready(weight_norm_classifier(cls_feat, weight, gamma))
    assert out.shape == (N, C)
    assert jnp.allclose(out, _reference(cls_feat, weight, gamma), atol=1e-4, rtol=1e-4)

    # Uneven shapes exercise the padding/slicing path.
    N2, C2 = 100, 300
    x2 = jax.random.normal(jax.random.PRNGKey(1), (N2, D), dtype=jnp.float32)
    w2 = jax.random.uniform(
        jax.random.PRNGKey(2), (C2, D), minval=-stdv, maxval=stdv, dtype=jnp.float32
    )
    out2 = jax.block_until_ready(weight_norm_classifier(x2, w2, gamma))
    assert out2.shape == (N2, C2)
    assert jnp.allclose(out2, _reference(x2, w2, gamma), atol=1e-4, rtol=1e-4)

    # bf16-MXU fast path (f32 accumulation): looser tolerance.
    out3 = jax.block_until_ready(
        weight_norm_classifier(cls_feat, weight, gamma, use_bf16_matmul=True))
    assert out3.shape == (N, C)
    assert jnp.allclose(out3, _reference(cls_feat, weight, gamma), atol=5e-2, rtol=5e-2)

    print("KERNEL_OK")
</pallas_src>

<mosaic_0001>
module attributes {stable_mosaic.version = 11 : i64} {
  func.func @_wn_classifier_kernel(%arg0: i32, %arg1: i32, %arg2: memref<1xf32, #tpu.memory_space<smem>>, %arg3: memref<256x256xf32, #tpu.memory_space<vmem>>, %arg4: memref<256x256xf32, #tpu.memory_space<vmem>>, %arg5: memref<256x256xf32, #tpu.memory_space<vmem>>, %arg6: memref<1x256xf32, #tpu.memory_space<vmem>>) attributes {dimension_semantics = [#tpu.dimension_semantics<parallel>, #tpu.dimension_semantics<arbitrary>], iteration_bounds = array<i64: 2, 1>, scalar_prefetch = 0 : i64, scratch_operands = 1 : i64, tpu.core_type = #tpu.core_type<tc>, window_params = [{transform_indices = @transform_0, window_bounds = array<i64: 1>}, {transform_indices = @transform_1, window_bounds = array<i64: 256, 256>}, {transform_indices = @transform_2, window_bounds = array<i64: 256, 256>}, {transform_indices = @transform_3, window_bounds = array<i64: 256, 256>}]} {
    %c0_i32 = arith.constant 0 : i32
    %0 = arith.cmpi eq, %arg1, %c0_i32 : i32
    %1 = arith.extui %0 : i1 to i32
    %c0_i32_0 = arith.constant 0 : i32
    %2 = arith.cmpi ne, %1, %c0_i32_0 : i32
    scf.if %2 {
      %c0_8 = arith.constant 0 : index
      %c0_9 = arith.constant 0 : index
      %10 = vector.load %arg4[%c0_8, %c0_9] : memref<256x256xf32, #tpu.memory_space<vmem>>, vector<256x256xf32>
      %cst_10 = arith.constant 1.000000e+00 : f32
      %11 = vector.broadcast %cst_10 : f32 to vector<8x256xf32>
      %12 = arith.mulf %10, %10 : vector<256x256xf32>
      %cst_11 = arith.constant dense<0.000000e+00> : vector<8x256xf32>
      %13 = tpu.matmul %11, %12, %cst_11 {dimension_numbers = #tpu.dot_dimension_numbers<[1], [1], [0], [0], [0, 0, 1, 0], [], []>} : vector<8x256xf32>, vector<256x256xf32>, vector<8x256xf32> -> vector<8x256xf32>
      %c0_12 = arith.constant 0 : index
      %14 = memref.load %arg2[%c0_12] : memref<1xf32, #tpu.memory_space<smem>>
      %15 = vector.extract_strided_slice %13 {offsets = [0, 0], sizes = [1, 256], strides = [1, 1]} : vector<8x256xf32> to vector<1x256xf32>
      %cst_13 = arith.constant 1.000000e-24 : f32
      %16 = vector.broadcast %cst_13 : f32 to vector<1x256xf32>
      %17 = arith.maximumf %15, %16 : vector<1x256xf32>
      %18 = math.rsqrt %17 : vector<1x256xf32>
      %19 = vector.broadcast %14 : f32 to vector<1x256xf32>
      %20 = arith.mulf %19, %18 : vector<1x256xf32>
      %c0_14 = arith.constant 0 : index
      %c0_15 = arith.constant 0 : index
      %21 = vector.load %arg6[%c0_14, %c0_15] : memref<1x256xf32, #tpu.memory_space<vmem>>, vector<1x256xf32>
      tpu.vector_store %arg6[%c0_14, %c0_15], %20 {strides = array<i32>} : memref<1x256xf32, #tpu.memory_space<vmem>>, vector<1x256xf32>,
    } else {
    }
    %c0 = arith.constant 0 : index
    %c0_1 = arith.constant 0 : index
    %3 = vector.load %arg3[%c0, %c0_1] : memref<256x256xf32, #tpu.memory_space<vmem>>, vector<256x256xf32>
    %c0_2 = arith.constant 0 : index
    %c0_3 = arith.constant 0 : index
    %4 = vector.load %arg4[%c0_2, %c0_3] : memref<256x256xf32, #tpu.memory_space<vmem>>, vector<256x256xf32>
    %cst = arith.constant dense<0.000000e+00> : vector<256x256xf32>
    %5 = tpu.matmul %3, %4, %cst {dimension_numbers = #tpu.dot_dimension_numbers<[1], [1], [0], [0], [0, 0, 1, 0], [], []>} : vector<256x256xf32>, vector<256x256xf32>, vector<256x256xf32> -> vector<256x256xf32>
    %c0_4 = arith.constant 0 : index
    %c0_5 = arith.constant 0 : index
    %6 = vector.load %arg6[%c0_4, %c0_5] : memref<1x256xf32, #tpu.memory_space<vmem>>, vector<1x256xf32>
    %7 = vector.broadcast %6 : vector<1x256xf32> to vector<256x256xf32>
    %8 = arith.mulf %5, %7 : vector<256x256xf32>
    %c0_6 = arith.constant 0 : index
    %c0_7 = arith.constant 0 : index
    %9 = vector.load %arg5[%c0_6, %c0_7] : memref<256x256xf32, #tpu.memory_space<vmem>>, vector<256x256xf32>
    tpu.vector_store %arg5[%c0_6, %c0_7], %8 {strides = array<i32>} : memref<256x256xf32, #tpu.memory_space<vmem>>, vector<256x256xf32>,
    return
  }
  func.func @transform_0(%arg0: i32, %arg1: i32) -> i32 {
    %c0_i32 = arith.constant 0 : i32
    %c0_i32_0 = arith.constant 0 : i32
    return %c0_i32 : i32
  }
  func.func @transform_1(%arg0: i32, %arg1: i32) -> (i32, i32) {
    %c0_i32 = arith.constant 0 : i32
    %c0_i32_0 = arith.constant 0 : i32
    return %arg1, %c0_i32 : i32, i32
  }
  func.func @transform_2(%arg0: i32, %arg1: i32) -> (i32, i32) {
    %c0_i32 = arith.constant 0 : i32
    %c0_i32_0 = arith.constant 0 : i32
    return %arg0, %c0_i32 : i32, i32
  }
  func.func @transform_3(%arg0: i32, %arg1: i32) -> (i32, i32) {
    %c0_i32 = arith.constant 0 : i32
    return %arg1, %arg0 : i32, i32
  }
}

</mosaic_0001>

<llo_original>
// kernel: tpu_custom_call.1
$region0: #{tpu_custom_call.1}
  #allocation0 [shape = 'u32[]', space=smem, size = 0x4, offset = 0x4, fixed_abs, tag = 'smem constant byte address 0x4 - core index']
  #allocation1 [shape = 'u32[144,128]{1,0:T(1,128)}', space=vmem, size = 0x12000, scoped, tag = 'internal scratch']
  #allocation2 [shape = 'f32[1,256]{1,0:T(1,128)}', space=vmem, size = 0x400, scoped, tag = 'scratch operand']
  #allocation3 [shape = 'f32[1]{0:T(128)S(6)}', space=smem, size = 0x200, scoped, tag = 'scoped memory for tpu_custom_call.1']
  %s0 = inlined_call_operand.<no memory space> [shape: f32[1], index: 0, kind: input, shape index: {}]
  %s1 = inlined_call_operand.hbm [shape: f32[256,256], index: 1, kind: input, shape index: {}]
  %s2 = inlined_call_operand.hbm [shape: f32[512,256], index: 2, kind: input, shape index: {}]
  %s3 = inlined_call_operand.hbm [shape: f32[256,512], index: 3, kind: output, shape index: {}]
  %s4 = sld [smem:[#allocation0]]
  $region57: #{tpu_custom_call.1} parent=0
    _
  %s6 = ssub.s32 1, %s4
  %s7 = scalar_select 0, %s6, %s4
  %8 = sst [smem:[#allocation3]] %s0
  $region1: #{tpu_custom_call.1} parent=0
    #allocation4 [shape = 'u8[262144]{0}', space=vmem, size = 0x40000, scoped, tag = 'input window, operand 1, single buffered']
    #allocation5 [shape = 's32[2]{0}', space=sflag, size = 0x8, scoped, tag = 'scoped memory for tpu_custom_call.1']
    #allocation6 [shape = 's32[2]{0}', space=sflag, size = 0x8, scoped, tag = 'scoped memory for tpu_custom_call.1']
    #allocation7 [shape = 'u8[524288]{0}', space=vmem, size = 0x80000, scoped, tag = 'input window, operand 2']
    #allocation8 [shape = 's32[2]{0}', space=sflag, size = 0x8, scoped, tag = 'scoped memory for tpu_custom_call.1']
    #allocation9 [shape = 'u8[524288]{0}', space=vmem, size = 0x80000, scoped, tag = 'output window, operand 0']
    %9 = vsyncpa [#allocation5], 0
    %10 = vsyncpa [#allocation8], 0
    %s11 = scalar_lea.sflag [#allocation8], 1
    %12 = vsyncpa %s11, 0
    %13 = vsyncpa [#allocation6], 0
    %s14 = scalar_lea.sflag [#allocation6], 1
    %15 = vsyncpa %s14, 0
    loop: start=0, step=1, limit=4
    $region2: #{tpu_custom_call.1} parent=1 // loop_pre_header
      _
    $region3: #{tpu_custom_call.1} parent=1 // loop_header
      %s17 = sphi 0, %s21
      %p18 = scmp.ge.s32.totalorder %s17, 4
      %s24 = sphi 0, %s36
      %s25 = sphi 0, %s32
      %s26 = sphi 0, %s24
      %s27 = sphi 0, %s25
      %s28 = sphi 0, %s26
      %s29 = sphi 0, %s27
      %s37 = sphi 0, %s37
      %s39 = sphi 0, %s37
      %s40 = sphi 0, %s39
      %s54 = sphi 0, %s40
      %s60 = sphi 0, %s62
      %s63 = sphi 0, %s60
      %s64 = sphi 0, %s63
      %s80 = sphi 0, %s64
      %s86 = sphi 0, %s88
      %s89 = sphi 0, %s86
      %s90 = sphi 0, %s89
      %s106 = sphi 0, %s90
      %s114 = sphi 0, %s116
      %s117 = sphi 0, %s114
      %s118 = sphi 0, %s117
      %s134 = sphi 0, %s118
    $region4: #{tpu_custom_call.1} parent=1 // loop_header_branch
      %20 = sbr.rel (%p18) target = $region8
    $region5: #{tpu_custom_call.1} parent=1 // loop_body
      %s22 = ssub.s32 %s17, 1
      %s23 = ssub.s32 %s17, 2
      %s30 = sadd.s32 1, %s25
      %p31 = scmp.ge.s32.totalorder %s30, 1
      %s32 = scalar_select %p31, 0, %s30
      %s33 = sadd.s32 1, %s24
      %s34 = scalar_select %p31, %s33, %s24
      %p35 = scmp.ge.s32.totalorder %s34, 2
      %s36 = scalar_select %p35, 0, %s34
      %s38 = sadd.s32 %s37, 1
      %p41 = scmp.eq.s32.totalorder %s17, 1
      %p42 = scmp.ne.s32.totalorder %s37, %s39
      %p43 = scmp.eq.s32.totalorder %s17, 0
      %p44 = por %p42, %p43
      %p45 = scmp.ne.s32.totalorder %s37, %s39
      %p46 = scmp.eq.s32.totalorder %s22, 1
      %p47 = por %p45, %p46
      %p48 = scmp.ne.s32.totalorder %s39, %s40
      %p49 = scmp.eq.s32.totalorder %s22, 0
      %p50 = por %p48, %p49
      %p51 = scmp.ne.s32.totalorder %s39, %s40
      %p52 = scmp.eq.s32.totalorder %s23, 1
      %p53 = por %p51, %p52
      %p55 = scmp.ne.s32.totalorder %s40, %s54
      %p56 = scmp.eq.s32.totalorder %s23, 0
      %p57 = por %p55, %p56
      %s58 = ssub.s32 %s25, %s32
      %p59 = scmp.eq.s32.totalorder %s58, 0
      %s61 = sadd.s32 %s60, 1
      %s62 = scalar_select %p59, %s60, %s61
      %p65 = pneg %p59
      %p66 = scmp.eq.s32.totalorder %s17, 1
      %p67 = por %p65, %p66
      %p68 = scmp.ne.s32.totalorder %s60, %s63
      %p69 = scmp.eq.s32.totalorder %s17, 0
      %p70 = por %p68, %p69
      %p71 = scmp.ne.s32.totalorder %s60, %s63
      %p72 = scmp.eq.s32.totalorder %s22, 1
      %p73 = por %p71, %p72
      %p74 = scmp.ne.s32.totalorder %s63, %s64
      %p75 = scmp.eq.s32.totalorder %s22, 0
      %p76 = por %p74, %p75
      %p77 = scmp.ne.s32.totalorder %s63, %s64
      %p78 = scmp.eq.s32.totalorder %s23, 1
      %p79 = por %p77, %p78
      %p81 = scmp.ne.s32.totalorder %s64, %s80
      %p82 = scmp.eq.s32.totalorder %s23, 0
      %p83 = por %p81, %p82
      %s84 = ssub.s32 %s24, %s36
      %p85 = scmp.eq.s32.totalorder %s84, 0
      %s87 = sadd.s32 %s86, 1
      %s88 = scalar_select %p85, %s86, %s87
      %p91 = pneg %p85
      %p92 = scmp.eq.s32.totalorder %s17, 1
      %p93 = por %p91, %p92
      %p94 = scmp.ne.s32.totalorder %s86, %s89
      %p95 = scmp.eq.s32.totalorder %s17, 0
      %p96 = por %p94, %p95
      %p97 = scmp.ne.s32.totalorder %s86, %s89
      %p98 = scmp.eq.s32.totalorder %s22, 1
      %p99 = por %p97, %p98
      %p100 = scmp.ne.s32.totalorder %s89, %s90
      %p101 = scmp.eq.s32.totalorder %s22, 0
      %p102 = por %p100, %p101
      %p103 = scmp.ne.s32.totalorder %s89, %s90
      %p104 = scmp.eq.s32.totalorder %s23, 1
      %p105 = por %p103, %p104
      %p107 = scmp.ne.s32.totalorder %s90, %s106
      %p108 = scmp.eq.s32.totalorder %s23, 0
      %p109 = por %p107, %p108
      %s110 = ssub.s32 %s25, %s32
      %s111 = ssub.s32 %s24, %s36
      %s112 = sor.u32 %s110, %s111
      %p113 = scmp.eq.s32.totalorder %s112, 0
      %s115 = sadd.s32 %s114, 1
      %s116 = scalar_select %p113, %s114, %s115
      %p119 = pneg %p113
      %p120 = scmp.eq.s32.totalorder %s17, 1
      %p121 = por %p119, %p120
      %p122 = scmp.ne.s32.totalorder %s114, %s117
      %p123 = scmp.eq.s32.totalorder %s17, 0
      %p124 = por %p122, %p123
      %p125 = scmp.ne.s32.totalorder %s114, %s117
      %p126 = scmp.eq.s32.totalorder %s22, 1
      %p127 = por %p125, %p126
      %p128 = scmp.ne.s32.totalorder %s117, %s118
      %p129 = scmp.eq.s32.totalorder %s22, 0
      %p130 = por %p128, %p129
      %p131 = scmp.ne.s32.totalorder %s117, %s118
      %p132 = scmp.eq.s32.totalorder %s23, 1
      %p133 = por %p131, %p132
      %p135 = scmp.ne.s32.totalorder %s118, %s134
      %p136 = scmp.eq.s32.totalorder %s23, 0
      %p137 = por %p135, %p136
      %p138 = scmp.le.s32.totalorder 1, %s17
      %p139 = scmp.lt.s32.totalorder %s17, 3
      %p140 = pnand %p138, %p139
      %p141 = pneg %p140
      // Predicated region
      $region9: #{tpu_custom_call.1} parent=5 // pred_check
        _
      $region10: #{tpu_custom_call.1} parent=5 // pred_check_branch
        %143 = sbr.rel (%p140) target = $region12
      $region11: #{tpu_custom_call.1} parent=5 // pred_region
        %s144 = ssub.s32 %s17, 1
        // Predicated region
        $region13: #{tpu_custom_call.1} parent=11 // pred_check
          %p145 = pneg %p50
        $region14: #{tpu_custom_call.1} parent=11 // pred_check_branch
          %147 = sbr.rel (%p145) target = $region16
        $region15: #{tpu_custom_call.1} parent=11 // pred_region
          _
        $region16: #{tpu_custom_call.1} parent=11 // pred_fallthru
          _
        // Predicated region
        $region17: #{tpu_custom_call.1} parent=11 // pred_check
          %p148 = pneg %p76
        $region18: #{tpu_custom_call.1} parent=11 // pred_check_branch
          %150 = sbr.rel (%p148) target = $region20
        $region19: #{tpu_custom_call.1} parent=11 // pred_region
          %s151 = smul.u32 32, %s27
          %s153 = ssub.s32 8192, 8192
          %154 = vsyncadd [#allocation5], %s153
          %s155 = smul.addr %s151, 2
          %s156 = smul.addr %s155, 128
          %s157 = scalar_lea.hbm %s1, %s156
          %s158 = sshll.u32 [#allocation4], 4
          %s159 = int_to_ptr.vmem [resolvable:$true] %s158
          %164 = dma.hbm_to_vmem [thread:$0]  %s157, 8192, %s159, [#allocation5], 256, 256, 16
        $region20: #{tpu_custom_call.1} parent=11 // pred_fallthru
          _
      $region12: #{tpu_custom_call.1} parent=5 // pred_fallthru
        _
      %p165 = scmp.lt.s32.totalorder %s17, 2
      // Predicated region
      $region21: #{tpu_custom_call.1} parent=5 // pred_check
        %p166 = pneg %p165
      $region22: #{tpu_custom_call.1} parent=5 // pred_check_branch
        %168 = sbr.rel (%p166) target = $region24
      $region23: #{tpu_custom_call.1} parent=5 // pred_region
        // Predicated region
        $region25: #{tpu_custom_call.1} parent=23 // pred_check
          %p169 = pneg %p96
        $region26: #{tpu_custom_call.1} parent=23 // pred_check_branch
          %171 = sbr.rel (%p169) target = $region28
        $region27: #{tpu_custom_call.1} parent=23 // pred_region
          %s172 = sand.u32 %s86, 1
          %s173 = scalar_lea.sflag [#allocation8], %s172
          %s174 = sand.u32 %s86, 1
          %s175 = smul.addr %s174, 512
          %s176 = scalar_lea.vmem [#allocation7], %s175
          %s177 = smul.u32 32, %s24
          %s179 = ssub.s32 8192, 8192
          %180 = vsyncadd %s173, %s179
          %s181 = smul.addr %s177, 2
          %s182 = smul.addr %s181, 128
          %s183 = scalar_lea.hbm %s2, %s182
          %s184 = sshll.u32 %s176, 4
          %s185 = int_to_ptr.vmem [resolvable:$true] %s184
          %190 = dma.hbm_to_vmem [thread:$0]  %s183, 8192, %s185, %s173, 256, 256, 16
        $region28: #{tpu_custom_call.1} parent=23 // pred_fallthru
          _
      $region24: #{tpu_custom_call.1} parent=5 // pred_fallthru
        _
      %p191 = scmp.le.s32.totalorder 1, %s17
      %p192 = scmp.lt.s32.totalorder %s17, 3
      %p193 = pnand %p191, %p192
      %p194 = pneg %p193
      // Predicated region
      $region29: #{tpu_custom_call.1} parent=5 // pred_check
        _
      $region30: #{tpu_custom_call.1} parent=5 // pred_check_branch
        %196 = sbr.rel (%p193) target = $region32
      $region31: #{tpu_custom_call.1} parent=5 // pred_region
        %s197 = ssub.s32 %s17, 1
        // Predicated region
        $region33: #{tpu_custom_call.1} parent=31 // pred_check
          %p198 = pneg %p76
        $region34: #{tpu_custom_call.1} parent=31 // pred_check_branch
          %200 = sbr.rel (%p198) target = $region36
        $region35: #{tpu_custom_call.1} parent=31 // pred_region
          %201 = dma.done [#allocation5], 8192
        $region36: #{tpu_custom_call.1} parent=31 // pred_fallthru
          _
        %s202 = sand.u32 %s89, 1
        %s203 = scalar_lea.sflag [#allocation8], %s202
        %s204 = sand.u32 %s89, 1
        %s205 = smul.addr %s204, 512
        %s206 = scalar_lea.vmem [#allocation7], %s205
        // Predicated region
        $region37: #{tpu_custom_call.1} parent=31 // pred_check
          %p207 = pneg %p102
        $region38: #{tpu_custom_call.1} parent=31 // pred_check_branch
          %209 = sbr.rel (%p207) target = $region40
        $region39: #{tpu_custom_call.1} parent=31 // pred_region
          %210 = dma.done %s203, 8192
        $region40: #{tpu_custom_call.1} parent=31 // pred_fallthru
          _
        %p211 = pneg %p50
        %p212 = pneg %p47
        %p213 = pneg %p76
        %p214 = pneg %p73
        %s215 = sand.u32 %s89, 1
        %s216 = scalar_lea.sflag [#allocation8], %s215
        %s217 = sand.u32 %s89, 1
        %s218 = smul.addr %s217, 512
        %s219 = scalar_lea.vmem [#allocation7], %s218
        %p220 = pneg %p102
        %p221 = pneg %p99
        %p222 = pneg %p130
        %p223 = pneg %p127
        %s224 = sand.u32 %s117, 1
        %s225 = scalar_lea.sflag [#allocation6], %s224
        %s226 = sand.u32 %s117, 1
        %s227 = smul.addr %s226, 512
        %s228 = scalar_lea.vmem [#allocation9], %s227
        %s229 = smul.u32 32, %s27
        %s230 = smul.u32 32, %s26
        %s231 = smul.u32 32, %s27
        %s232 = smul.u32 2, %s26
        %p233 = scmp.eq.s32.totalorder %s27, 0
        // Predicated region
        $region41: #{tpu_custom_call.1} parent=31 // pred_check
          %p234 = pneg %p233
        $region42: #{tpu_custom_call.1} parent=31 // pred_check_branch
          %236 = sbr.rel (%p234) target = $region44
        $region43: #{tpu_custom_call.1} parent=31 // pred_region
          %v237 = vld [vmem:[%s206] sm:$0xff]
          %v238 = vld [vmem:[%s206 + $0x8] sm:$0xff]
          %v239 = vld [vmem:[%s206 + $0x10] sm:$0xff]
          %v240 = vld [vmem:[%s206 + $0x18] sm:$0xff]
          %v241 = vld [vmem:[%s206 + $0x20] sm:$0xff]
          %v242 = vld [vmem:[%s206 + $0x28] sm:$0xff]
          %v243 = vld [vmem:[%s206 + $0x30] sm:$0xff]
          %v244 = vld [vmem:[%s206 + $0x38] sm:$0xff]
          %v245 = vld [vmem:[%s206 + $0x40] sm:$0xff]
          %v246 = vld [vmem:[%s206 + $0x48] sm:$0xff]
          %v247 = vld [vmem:[%s206 + $0x50] sm:$0xff]
          %v248 = vld [vmem:[%s206 + $0x58] sm:$0xff]
          %v249 = vld [vmem:[%s206 + $0x60] sm:$0xff]
          %v250 = vld [vmem:[%s206 + $0x68] sm:$0xff]
          %v251 = vld [vmem:[%s206 + $0x70] sm:$0xff]
          %v252 = vld [vmem:[%s206 + $0x78] sm:$0xff]
          %v253 = vld [vmem:[%s206 + $0x80] sm:$0xff]
          %v254 = vld [vmem:[%s206 + $0x88] sm:$0xff]
          %v255 = vld [vmem:[%s206 + $0x90] sm:$0xff]
          %v256 = vld [vmem:[%s206 + $0x98] sm:$0xff]
          %v257 = vld [vmem:[%s206 + $0xa0] sm:$0xff]
          %v258 = vld [vmem:[%s206 + $0xa8] sm:$0xff]
          %v259 = vld [vmem:[%s206 + $0xb0] sm:$0xff]
          %v260 = vld [vmem:[%s206 + $0xb8] sm:$0xff]
          %v261 = vld [vmem:[%s206 + $0xc0] sm:$0xff]
          %v262 = vld [vmem:[%s206 + $0xc8] sm:$0xff]
          %v263 = vld [vmem:[%s206 + $0xd0] sm:$0xff]
          %v264 = vld [vmem:[%s206 + $0xd8] sm:$0xff]
          %v265 = vld [vmem:[%s206 + $0xe0] sm:$0xff]
          %v266 = vld [vmem:[%s206 + $0xe8] sm:$0xff]
          %v267 = vld [vmem:[%s206 + $0xf0] sm:$0xff]
          %v268 = vld [vmem:[%s206 + $0xf8] sm:$0xff]
          %v269 = vld [vmem:[%s206 + $0x100] sm:$0xff]
          %v270 = vld [vmem:[%s206 + $0x108] sm:$0xff]
          %v271 = vld [vmem:[%s206 + $0x110] sm:$0xff]
          %v272 = vld [vmem:[%s206 + $0x118] sm:$0xff]
          %v273 = vld [vmem:[%s206 + $0x120] sm:$0xff]
          %v274 = vld [vmem:[%s206 + $0x128] sm:$0xff]
          %v275 = vld [vmem:[%s206 + $0x130] sm:$0xff]
          %v276 = vld [vmem:[%s206 + $0x138] sm:$0xff]
          %v277 = vld [vmem:[%s206 + $0x140] sm:$0xff]
          %v278 = vld [vmem:[%s206 + $0x148] sm:$0xff]
          %v279 = vld [vmem:[%s206 + $0x150] sm:$0xff]
          %v280 = vld [vmem:[%s206 + $0x158] sm:$0xff]
          %v281 = vld [vmem:[%s206 + $0x160] sm:$0xff]
          %v282 = vld [vmem:[%s206 + $0x168] sm:$0xff]
          %v283 = vld [vmem:[%s206 + $0x170] sm:$0xff]
          %v284 = vld [vmem:[%s206 + $0x178] sm:$0xff]
          %v285 = vld [vmem:[%s206 + $0x180] sm:$0xff]
          %v286 = vld [vmem:[%s206 + $0x188] sm:$0xff]
          %v287 = vld [vmem:[%s206 + $0x190] sm:$0xff]
          %v288 = vld [vmem:[%s206 + $0x198] sm:$0xff]
          %v289 = vld [vmem:[%s206 + $0x1a0] sm:$0xff]
          %v290 = vld [vmem:[%s206 + $0x1a8] sm:$0xff]
          %v291 = vld [vmem:[%s206 + $0x1b0] sm:$0xff]
          %v292 = vld [vmem:[%s206 + $0x1b8] sm:$0xff]
          %v293 = vld [vmem:[%s206 + $0x1c0] sm:$0xff]
          %v294 = vld [vmem:[%s206 + $0x1c8] sm:$0xff]
          %v295 = vld [vmem:[%s206 + $0x1d0] sm:$0xff]
          %v296 = vld [vmem:[%s206 + $0x1d8] sm:$0xff]
          %v297 = vld [vmem:[%s206 + $0x1e0] sm:$0xff]
          %v298 = vld [vmem:[%s206 + $0x1e8] sm:$0xff]
          %v299 = vld [vmem:[%s206 + $0x1f0] sm:$0xff]
          %v300 = vld [vmem:[%s206 + $0x1f8] sm:$0xff]
          %v301 = vmul.f32 %v237, %v237
          %v302 = vmul.f32 %v238, %v238
          %v303 = vmul.f32 %v239, %v239
          %v304 = vmul.f32 %v240, %v240
          %v305 = vmul.f32 %v241, %v241
          %v306 = vmul.f32 %v242, %v242
          %v307 = vmul.f32 %v243, %v243
          %v308 = vmul.f32 %v244, %v244
          %v309 = vmul.f32 %v245, %v245
          %v310 = vmul.f32 %v246, %v246
          %v311 = vmul.f32 %v247, %v247
          %v312 = vmul.f32 %v248, %v248
          %v313 = vmul.f32 %v249, %v249
          %v314 = vmul.f32 %v250, %v250
          %v315 = vmul.f32 %v251, %v251
          %v316 = vmul.f32 %v252, %v252
          %v317 = vmul.f32 %v253, %v253
          %v318 = vmul.f32 %v254, %v254
          %v319 = vmul.f32 %v255, %v255
          %v320 = vmul.f32 %v256, %v256
          %v321 = vmul.f32 %v257, %v257
          %v322 = vmul.f32 %v258, %v258
          %v323 = vmul.f32 %v259, %v259
          %v324 = vmul.f32 %v260, %v260
          %v325 = vmul.f32 %v261, %v261
          %v326 = vmul.f32 %v262, %v262
          %v327 = vmul.f32 %v263, %v263
          %v328 = vmul.f32 %v264, %v264
          %v329 = vmul.f32 %v265, %v265
          %v330 = vmul.f32 %v266, %v266
          %v331 = vmul.f32 %v267, %v267
          %v332 = vmul.f32 %v268, %v268
          %v333 = vmul.f32 %v269, %v269
          %v334 = vmul.f32 %v270, %v270
          %v335 = vmul.f32 %v271, %v271
          %v336 = vmul.f32 %v272, %v272
          %v337 = vmul.f32 %v273, %v273
          %v338 = vmul.f32 %v274, %v274
          %v339 = vmul.f32 %v275, %v275
          %v340 = vmul.f32 %v276, %v276
          %v341 = vmul.f32 %v277, %v277
          %v342 = vmul.f32 %v278, %v278
          %v343 = vmul.f32 %v279, %v279
          %v344 = vmul.f32 %v280, %v280
          %v345 = vmul.f32 %v281, %v281
          %v346 = vmul.f32 %v282, %v282
          %v347 = vmul.f32 %v283, %v283
          %v348 = vmul.f32 %v284, %v284
          %v349 = vmul.f32 %v285, %v285
          %v350 = vmul.f32 %v286, %v286
          %v351 = vmul.f32 %v287, %v287
          %v352 = vmul.f32 %v288, %v288
          %v353 = vmul.f32 %v289, %v289
          %v354 = vmul.f32 %v290, %v290
          %v355 = vmul.f32 %v291, %v291
          %v356 = vmul.f32 %v292, %v292
          %v357 = vmul.f32 %v293, %v293
          %v358 = vmul.f32 %v294, %v294
          %v359 = vmul.f32 %v295, %v295
          %v360 = vmul.f32 %v296, %v296
          %v361 = vmul.f32 %v297, %v297
          %v362 = vmul.f32 %v298, %v298
          %v363 = vmul.f32 %v299, %v299
          %v364 = vmul.f32 %v300, %v300
          %365 = vmatprep.subr.mxu0 %v302
          %366 = vmatpush1.xpose.msra.mxu0 %v301
          %367 = vmatprep.subr.mxu0 %v304
          %368 = vmatpush1.xpose.msra.mxu0 %v303
          %369 = vmatprep.subr.mxu0 %v306
          %370 = vmatpush1.xpose.msra.mxu0 %v305
          %371 = vmatprep.subr.mxu0 %v308
          %372 = vmatpush1.xpose.msra.mxu0 %v307
          %373 = vmatprep.subr.mxu0 %v310
          %374 = vmatpush1.xpose.msra.mxu0 %v309
          %375 = vmatprep.subr.mxu0 %v312
          %376 = vmatpush1.xpose.msra.mxu0 %v311
          %377 = vmatprep.subr.mxu0 %v314
          %378 = vmatpush1.xpose.msra.mxu0 %v313
          %379 = vmatprep.subr.mxu0 %v316
          %380 = vmatpush1.xpose.msra.mxu0 %v315
          %381 = vmatprep.subr.mxu0 %v318
          %382 = vmatpush1.xpose.msra.mxu0 %v317
          %383 = vmatprep.subr.mxu0 %v320
          %384 = vmatpush1.xpose.msra.mxu0 %v319
          %385 = vmatprep.subr.mxu0 %v322
          %386 = vmatpush1.xpose.msra.mxu0 %v321
          %387 = vmatprep.subr.mxu0 %v324
          %388 = vmatpush1.xpose.msra.mxu0 %v323
          %389 = vmatprep.subr.mxu0 %v326
          %390 = vmatpush1.xpose.msra.mxu0 %v325
          %391 = vmatprep.subr.mxu0 %v328
          %392 = vmatpush1.xpose.msra.mxu0 %v327
          %393 = vmatprep.subr.mxu0 %v330
          %394 = vmatpush1.xpose.msra.mxu0 %v329
          %395 = vmatprep.subr.mxu0 %v332
          %396 = vmatpush1.xpose.msra.mxu0 %v331
          %397 = vmatprep.subr.mxu0 %v334
          %398 = vmatpush1.xpose.msra.mxu0 %v333
          %399 = vmatprep.subr.mxu0 %v336
          %400 = vmatpush1.xpose.msra.mxu0 %v335
          %401 = vmatprep.subr.mxu0 %v338
          %402 = vmatpush1.xpose.msra.mxu0 %v337
          %403 = vmatprep.subr.mxu0 %v340
          %404 = vmatpush1.xpose.msra.mxu0 %v339
          %405 = vmatprep.subr.mxu0 %v342
          %406 = vmatpush1.xpose.msra.mxu0 %v341
          %407 = vmatprep.subr.mxu0 %v344
          %408 = vmatpush1.xpose.msra.mxu0 %v343
          %409 = vmatprep.subr.mxu0 %v346
          %410 = vmatpush1.xpose.msra.mxu0 %v345
          %411 = vmatprep.subr.mxu0 %v348
          %412 = vmatpush1.xpose.msra.mxu0 %v347
          %413 = vmatprep.subr.mxu0 %v350
          %414 = vmatpush1.xpose.msra.mxu0 %v349
          %415 = vmatprep.subr.mxu0 %v352
          %416 = vmatpush1.xpose.msra.mxu0 %v351
          %417 = vmatprep.subr.mxu0 %v354
          %418 = vmatpush1.xpose.msra.mxu0 %v353
          %419 = vmatprep.subr.mxu0 %v356
          %420 = vmatpush1.xpose.msra.mxu0 %v355
          %421 = vmatprep.subr.mxu0 %v358
          %422 = vmatpush1.xpose.msra.mxu0 %v357
          %423 = vmatprep.subr.mxu0 %v360
          %424 = vmatpush1.xpose.msra.mxu0 %v359
          %425 = vmatprep.subr.mxu0 %v362
          %426 = vmatpush1.xpose.msra.mxu0 %v361
          %427 = vmatprep.subr.mxu0 %v364
          %428 = vmatpush1.xpose.msra.mxu0 %v363
          %429 = vmatprep.mubr.f32.mxu0 1.0
          %430 = vmatmul.mubr.f32.gmra.mrb[0].mxu0 1.0
          %v431 = vpop.f32.mrb[0].mxu0
          %v432 = vadd.f32 0.0, %v431
          %v433 = vpop.f32.mrb[0].mxu0
          %v434 = vadd.f32 0.0, %v433
          %435 = vdwg.mxu0
          %s436 = sld [smem:[#allocation3]]
          %v437 = vmax.f32 %v432, 1e-24
          %v438 = vmax.f32 %v434, 1e-24
          %v439 = vrsqrt.pop %v437
          %v440 = vrsqrt.pop %v438
          %v441 = vstv %s436
          %v442 = vmul.f32 %v441, %v439
          %v443 = vmul.f32 %v441, %v440
          %v446 = vcombine.low %v442, %v443
          %v448 = vunpack.c.l.s4 1966171168
          %v449 = vunpack.c.0.s8 %v448
          %v450 = vlaneseq
          %v451 = vshrl.u32 %v450, 7
          %v452 = vsub.s32 %v449, %v451
          %v453 = vrot.slane %v446, %v452
          %v455 = vunpack.c.l.s4 1966171168
          %v456 = vunpack.c.0.s8 %v455
          %v457 = vlaneseq
          %v458 = vshrl.u32 %v457, 7
          %v459 = vsub.s32 %v456, %v458
          %v460 = vrot.slane %v453, %v459
          %v462 = vlaneseq
          %vm463 = vcmp.ge.s32.totalorder %v462, 0
          %vm464 = vcmp.lt.s32.totalorder %v462, 256
          %vm465 = vmand %vm463, %vm464
          %466 = vst.msk [vmem:[#allocation2] sm:$0x3] %vm465, %v460
        $region44: #{tpu_custom_call.1} parent=31 // pred_fallthru
          _
        %v467 = vld [vmem:[#allocation4] sm:$0xff]
        %v468 = vld [vmem:[#allocation4 + $0x8] sm:$0xff]
        %v469 = vld [vmem:[#allocation4 + $0x10] sm:$0xff]
        %v470 = vld [vmem:[#allocation4 + $0x18] sm:$0xff]
        %v471 = vld [vmem:[#allocation4 + $0x20] sm:$0xff]
        %v472 = vld [vmem:[#allocation4 + $0x28] sm:$0xff]
        %v473 = vld [vmem:[#allocation4 + $0x30] sm:$0xff]
        %v474 = vld [vmem:[#allocation4 + $0x38] sm:$0xff]
        %v475 = vld [vmem:[#allocation4 + $0x40] sm:$0xff]
        %v476 = vld [vmem:[#allocation4 + $0x48] sm:$0xff]
        %v477 = vld [vmem:[#allocation4 + $0x50] sm:$0xff]
        %v478 = vld [vmem:[#allocation4 + $0x58] sm:$0xff]
        %v479 = vld [vmem:[#allocation4 + $0x60] sm:$0xff]
        %v480 = vld [vmem:[#allocation4 + $0x68] sm:$0xff]
        %v481 = vld [vmem:[#allocation4 + $0x70] sm:$0xff]
        %v482 = vld [vmem:[#allocation4 + $0x78] sm:$0xff]
        %v483 = vld [vmem:[#allocation4 + $0x80] sm:$0xff]
        %v484 = vld [vmem:[#allocation4 + $0x88] sm:$0xff]
        %v485 = vld [vmem:[#allocation4 + $0x90] sm:$0xff]
        %v486 = vld [vmem:[#allocation4 + $0x98] sm:$0xff]
        %v487 = vld [vmem:[#allocation4 + $0xa0] sm:$0xff]
        %v488 = vld [vmem:[#allocation4 + $0xa8] sm:$0xff]
        %v489 = vld [vmem:[#allocation4 + $0xb0] sm:$0xff]
        %v490 = vld [vmem:[#allocation4 + $0xb8] sm:$0xff]
        %v491 = vld [vmem:[#allocation4 + $0xc0] sm:$0xff]
        %v492 = vld [vmem:[#allocation4 + $0xc8] sm:$0xff]
        %v493 = vld [vmem:[#allocation4 + $0xd0] sm:$0xff]
        %v494 = vld [vmem:[#allocation4 + $0xd8] sm:$0xff]
        %v495 = vld [vmem:[#allocation4 + $0xe0] sm:$0xff]
        %v496 = vld [vmem:[#allocation4 + $0xe8] sm:$0xff]
        %v497 = vld [vmem:[#allocation4 + $0xf0] sm:$0xff]
        %v498 = vld [vmem:[#allocation4 + $0xf8] sm:$0xff]
        %v499 = vld [vmem:[#allocation4 + $0x100] sm:$0xff]
        %v500 = vld [vmem:[#allocation4 + $0x108] sm:$0xff]
        %v501 = vld [vmem:[#allocation4 + $0x110] sm:$0xff]
        %v502 = vld [vmem:[#allocation4 + $0x118] sm:$0xff]
        %v503 = vld [vmem:[#allocation4 + $0x120] sm:$0xff]
        %v504 = vld [vmem:[#allocation4 + $0x128] sm:$0xff]
        %v505 = vld [vmem:[#allocation4 + $0x130] sm:$0xff]
        %v506 = vld [vmem:[#allocation4 + $0x138] sm:$0xff]
        %v507 = vld [vmem:[#allocation4 + $0x140] sm:$0xff]
        %v508 = vld [vmem:[#allocation4 + $0x148] sm:$0xff]
        %v509 = vld [vmem:[#allocation4 + $0x150] sm:$0xff]
        %v510 = vld [vmem:[#allocation4 + $0x158] sm:$0xff]
        %v511 = vld [vmem:[#allocation4 + $0x160] sm:$0xff]
        %v512 = vld [vmem:[#allocation4 + $0x168] sm:$0xff]
        %v513 = vld [vmem:[#allocation4 + $0x170] sm:$0xff]
        %v514 = vld [vmem:[#allocation4 + $0x178] sm:$0xff]
        %v515 = vld [vmem:[#allocation4 + $0x180] sm:$0xff]
        %v516 = vld [vmem:[#allocation4 + $0x188] sm:$0xff]
        %v517 = vld [vmem:[#allocation4 + $0x190] sm:$0xff]
        %v518 = vld [vmem:[#allocation4 + $0x198] sm:$0xff]
        %v519 = vld [vmem:[#allocation4 + $0x1a0] sm:$0xff]
        %v520 = vld [vmem:[#allocation4 + $0x1a8] sm:$0xff]
        %v521 = vld [vmem:[#allocation4 + $0x1b0] sm:$0xff]
        %v522 = vld [vmem:[#allocation4 + $0x1b8] sm:$0xff]
        %v523 = vld [vmem:[#allocation4 + $0x1c0] sm:$0xff]
        %v524 = vld [vmem:[#allocation4 + $0x1c8] sm:$0xff]
        %v525 = vld [vmem:[#allocation4 + $0x1d0] sm:$0xff]
        %v526 = vld [vmem:[#allocation4 + $0x1d8] sm:$0xff]
        %v527 = vld [vmem:[#allocation4 + $0x1e0] sm:$0xff]
        %v528 = vld [vmem:[#allocation4 + $0x1e8] sm:$0xff]
        %v529 = vld [vmem:[#allocation4 + $0x1f0] sm:$0xff]
        %v530 = vld [vmem:[#allocation4 + $0x1f8] sm:$0xff]
        %v531 = vld [vmem:[%s206] sm:$0xff]
        %v532 = vld [vmem:[%s206 + $0x8] sm:$0xff]
        %v533 = vld [vmem:[%s206 + $0x10] sm:$0xff]
        %v534 = vld [vmem:[%s206 + $0x18] sm:$0xff]
        %v535 = vld [vmem:[%s206 + $0x20] sm:$0xff]
        %v536 = vld [vmem:[%s206 + $0x28] sm:$0xff]
        %v537 = vld [vmem:[%s206 + $0x30] sm:$0xff]
        %v538 = vld [vmem:[%s206 + $0x38] sm:$0xff]
        %v539 = vld [vmem:[%s206 + $0x40] sm:$0xff]
        %v540 = vld [vmem:[%s206 + $0x48] sm:$0xff]
        %v541 = vld [vmem:[%s206 + $0x50] sm:$0xff]
        %v542 = vld [vmem:[%s206 + $0x58] sm:$0xff]
        %v543 = vld [vmem:[%s206 + $0x60] sm:$0xff]
        %v544 = vld [vmem:[%s206 + $0x68] sm:$0xff]
        %v545 = vld [vmem:[%s206 + $0x70] sm:$0xff]
        %v546 = vld [vmem:[%s206 + $0x78] sm:$0xff]
        %v547 = vld [vmem:[%s206 + $0x80] sm:$0xff]
        %v548 = vld [vmem:[%s206 + $0x88] sm:$0xff]
        %v549 = vld [vmem:[%s206 + $0x90] sm:$0xff]
        %v550 = vld [vmem:[%s206 + $0x98] sm:$0xff]
        %v551 = vld [vmem:[%s206 + $0xa0] sm:$0xff]
        %v552 = vld [vmem:[%s206 + $0xa8] sm:$0xff]
        %v553 = vld [vmem:[%s206 + $0xb0] sm:$0xff]
        %v554 = vld [vmem:[%s206 + $0xb8] sm:$0xff]
        %v555 = vld [vmem:[%s206 + $0xc0] sm:$0xff]
        %v556 = vld [vmem:[%s206 + $0xc8] sm:$0xff]
        %v557 = vld [vmem:[%s206 + $0xd0] sm:$0xff]
        %v558 = vld [vmem:[%s206 + $0xd8] sm:$0xff]
        %v559 = vld [vmem:[%s206 + $0xe0] sm:$0xff]
        %v560 = vld [vmem:[%s206 + $0xe8] sm:$0xff]
        %v561 = vld [vmem:[%s206 + $0xf0] sm:$0xff]
        %v562 = vld [vmem:[%s206 + $0xf8] sm:$0xff]
        %v563 = vld [vmem:[%s206 + $0x100] sm:$0xff]
        %v564 = vld [vmem:[%s206 + $0x108] sm:$0xff]
        %v565 = vld [vmem:[%s206 + $0x110] sm:$0xff]
        %v566 = vld [vmem:[%s206 + $0x118] sm:$0xff]
        %v567 = vld [vmem:[%s206 + $0x120] sm:$0xff]
        %v568 = vld [vmem:[%s206 + $0x128] sm:$0xff]
        %v569 = vld [vmem:[%s206 + $0x130] sm:$0xff]
        %v570 = vld [vmem:[%s206 + $0x138] sm:$0xff]
        %v571 = vld [vmem:[%s206 + $0x140] sm:$0xff]
        %v572 = vld [vmem:[%s206 + $0x148] sm:$0xff]
        %v573 = vld [vmem:[%s206 + $0x150] sm:$0xff]
        %v574 = vld [vmem:[%s206 + $0x158] sm:$0xff]
        %v575 = vld [vmem:[%s206 + $0x160] sm:$0xff]
        %v576 = vld [vmem:[%s206 + $0x168] sm:$0xff]
        %v577 = vld [vmem:[%s206 + $0x170] sm:$0xff]
        %v578 = vld [vmem:[%s206 + $0x178] sm:$0xff]
        %v579 = vld [vmem:[%s206 + $0x180] sm:$0xff]
        %v580 = vld [vmem:[%s206 + $0x188] sm:$0xff]
        %v581 = vld [vmem:[%s206 + $0x190] sm:$0xff]
        %v582 = vld [vmem:[%s206 + $0x198] sm:$0xff]
        %v583 = vld [vmem:[%s206 + $0x1a0] sm:$0xff]
        %v584 = vld [vmem:[%s206 + $0x1a8] sm:$0xff]
        %v585 = vld [vmem:[%s206 + $0x1b0] sm:$0xff]
        %v586 = vld [vmem:[%s206 + $0x1b8] sm:$0xff]
        %v587 = vld [vmem:[%s206 + $0x1c0] sm:$0xff]
        %v588 = vld [vmem:[%s206 + $0x1c8] sm:$0xff]
        %v589 = vld [vmem:[%s206 + $0x1d0] sm:$0xff]
        %v590 = vld [vmem:[%s206 + $0x1d8] sm:$0xff]
        %v591 = vld [vmem:[%s206 + $0x1e0] sm:$0xff]
        %v592 = vld [vmem:[%s206 + $0x1e8] sm:$0xff]
        %v593 = vld [vmem:[%s206 + $0x1f0] sm:$0xff]
        %v594 = vld [vmem:[%s206 + $0x1f8] sm:$0xff]
        %595 = vmatprep.subr.mxu0 %v532
        %596 = vmatpush1.xpose.msra.mxu0 %v531
        %597 = vmatprep.subr.mxu0 %v534
        %598 = vmatpush1.xpose.msra.mxu0 %v533
        %599 = vmatprep.subr.mxu0 %v536
        %600 = vmatpush1.xpose.msra.mxu0 %v535
        %601 = vmatprep.subr.mxu0 %v538
        %602 = vmatpush1.xpose.msra.mxu0 %v537
        %603 = vmatprep.subr.mxu0 %v540
        %604 = vmatpush1.xpose.msra.mxu0 %v539
        %605 = vmatprep.subr.mxu0 %v542
        %606 = vmatpush1.xpose.msra.mxu0 %v541
        %607 = vmatprep.subr.mxu0 %v544
        %608 = vmatpush1.xpose.msra.mxu0 %v543
        %609 = vmatprep.subr.mxu0 %v546
        %610 = vmatpush1.xpose.msra.mxu0 %v545
        %611 = vmatprep.subr.mxu0 %v548
        %612 = vmatpush1.xpose.msra.mxu0 %v547
        %613 = vmatprep.subr.mxu0 %v550
        %614 = vmatpush1.xpose.msra.mxu0 %v549
        %615 = vmatprep.subr.mxu0 %v552
        %616 = vmatpush1.xpose.msra.mxu0 %v551
        %617 = vmatprep.subr.mxu0 %v554
        %618 = vmatpush1.xpose.msra.mxu0 %v553
        %619 = vmatprep.subr.mxu0 %v556
        %620 = vmatpush1.xpose.msra.mxu0 %v555
        %621 = vmatprep.subr.mxu0 %v558
        %622 = vmatpush1.xpose.msra.mxu0 %v557
        %623 = vmatprep.subr.mxu0 %v560
        %624 = vmatpush1.xpose.msra.mxu0 %v559
        %625 = vmatprep.subr.mxu0 %v562
        %626 = vmatpush1.xpose.msra.mxu0 %v561
        %627 = vmatprep.subr.mxu0 %v564
        %628 = vmatpush1.xpose.msra.mxu0 %v563
        %629 = vmatprep.subr.mxu0 %v566
        %630 = vmatpush1.xpose.msra.mxu0 %v565
        %631 = vmatprep.subr.mxu0 %v568
        %632 = vmatpush1.xpose.msra.mxu0 %v567
        %633 = vmatprep.subr.mxu0 %v570
        %634 = vmatpush1.xpose.msra.mxu0 %v569
        %635 = vmatprep.subr.mxu0 %v572
        %636 = vmatpush1.xpose.msra.mxu0 %v571
        %637 = vmatprep.subr.mxu0 %v574
        %638 = vmatpush1.xpose.msra.mxu0 %v573
        %639 = vmatprep.subr.mxu0 %v576
        %640 = vmatpush1.xpose.msra.mxu0 %v575
        %641 = vmatprep.subr.mxu0 %v578
        %642 = vmatpush1.xpose.msra.mxu0 %v577
        %643 = vmatprep.subr.mxu0 %v580
        %644 = vmatpush1.xpose.msra.mxu0 %v579
        %645 = vmatprep.subr.mxu0 %v582
        %646 = vmatpush1.xpose.msra.mxu0 %v581
        %647 = vmatprep.subr.mxu0 %v584
        %648 = vmatpush1.xpose.msra.mxu0 %v583
        %649 = vmatprep.subr.mxu0 %v586
        %650 = vmatpush1.xpose.msra.mxu0 %v585
        %651 = vmatprep.subr.mxu0 %v588
        %652 = vmatpush1.xpose.msra.mxu0 %v587
        %653 = vmatprep.subr.mxu0 %v590
        %654 = vmatpush1.xpose.msra.mxu0 %v589
        %655 = vmatprep.subr.mxu0 %v592
        %656 = vmatpush1.xpose.msra.mxu0 %v591
        %657 = vmatprep.subr.mxu0 %v594
        %658 = vmatpush1.xpose.msra.mxu0 %v593
        %659 = vmatprep.mubr.f32.mxu0 %v468
        %660 = vmatmul.mubr.f32.gmra.mrb[0].mxu0 %v467
        %v661 = vpop.f32.mrb[0].mxu0
        %v662 = vadd.f32 0.0, %v661
        %v663 = vpop.f32.mrb[0].mxu0
        %v664 = vadd.f32 0.0, %v663
        %665 = vmatprep.mubr.f32.mxu0 %v470
        %666 = vmatmul.mubr.f32.gmra.mrb[0].mxu0 %v469
        %v667 = vpop.f32.mrb[0].mxu0
        %v668 = vadd.f32 0.0, %v667
        %v669 = vpop.f32.mrb[0].mxu0
        %v670 = vadd.f32 0.0, %v669
        %671 = vmatprep.mubr.f32.mxu0 %v472
        %672 = vmatmul.mubr.f32.gmra.mrb[0].mxu0 %v471
        %v673 = vpop.f32.mrb[0].mxu0
        %v674 = vadd.f32 0.0, %v673
        %v675 = vpop.f32.mrb[0].mxu0
        %v676 = vadd.f32 0.0, %v675
        %677 = vmatprep.mubr.f32.mxu0 %v474
        %678 = vmatmul.mubr.f32.gmra.mrb[0].mxu0 %v473
        %v679 = vpop.f32.mrb[0].mxu0
        %v680 = vadd.f32 0.0, %v679
        %v681 = vpop.f32.mrb[0].mxu0
        %v682 = vadd.f32 0.0, %v681
        %683 = vmatprep.mubr.f32.mxu0 %v476
        %684 = vmatmul.mubr.f32.gmra.mrb[0].mxu0 %v475
        %v685 = vpop.f32.mrb[0].mxu0
        %v686 = vadd.f32 0.0, %v685
        %v687 = vpop.f32.mrb[0].mxu0
        %v688 = vadd.f32 0.0, %v687
        %689 = vmatprep.mubr.f32.mxu0 %v478
        %690 = vmatmul.mubr.f32.gmra.mrb[0].mxu0 %v477
        %v691 = vpop.f32.mrb[0].mxu0
        %v692 = vadd.f32 0.0, %v691
        %v693 = vpop.f32.mrb[0].mxu0
        %v694 = vadd.f32 0.0, %v693
        %695 = vmatprep.mubr.f32.mxu0 %v480
        %696 = vmatmul.mubr.f32.gmra.mrb[0].mxu0 %v479
        %v697 = vpop.f32.mrb[0].mxu0
        %v698 = vadd.f32 0.0, %v697
        %v699 = vpop.f32.mrb[0].mxu0
        %v700 = vadd.f32 0.0, %v699
        %701 = vmatprep.mubr.f32.mxu0 %v482
        %702 = vmatmul.mubr.f32.gmra.mrb[0].mxu0 %v481
        %v703 = vpop.f32.mrb[0].mxu0
        %v704 = vadd.f32 0.0, %v703
        %v705 = vpop.f32.mrb[0].mxu0
        %v706 = vadd.f32 0.0, %v705
        %707 = vmatprep.mubr.f32.mxu0 %v484
        %708 = vmatmul.mubr.f32.gmra.mrb[0].mxu0 %v483
        %v709 = vpop.f32.mrb[0].mxu0
        %v710 = vadd.f32 0.0, %v709
        %v711 = vpop.f32.mrb[0].mxu0
        %v712 = vadd.f32 0.0, %v711
        %713 = vmatprep.mubr.f32.mxu0 %v486
        %714 = vmatmul.mubr.f32.gmra.mrb[0].mxu0 %v485
        %v715 = vpop.f32.mrb[0].mxu0
        %v716 = vadd.f32 0.0, %v715
        %v717 = vpop.f32.mrb[0].mxu0
        %v718 = vadd.f32 0.0, %v717
        %719 = vmatprep.mubr.f32.mxu0 %v488
        %720 = vmatmul.mubr.f32.gmra.mrb[0].mxu0 %v487
        %v721 = vpop.f32.mrb[0].mxu0
        %v722 = vadd.f32 0.0, %v721
        %v723 = vpop.f32.mrb[0].mxu0
        %v724 = vadd.f32 0.0, %v723
        %725 = vmatprep.mubr.f32.mxu0 %v490
        %726 = vmatmul.mubr.f32.gmra.mrb[0].mxu0 %v489
        %v727 = vpop.f32.mrb[0].mxu0
        %v728 = vadd.f32 0.0, %v727
        %v729 = vpop.f32.mrb[0].mxu0
        %v730 = vadd.f32 0.0, %v729
        %731 = vmatprep.mubr.f32.mxu0 %v492
        %732 = vmatmul.mubr.f32.gmra.mrb[0].mxu0 %v491
        %v733 = vpop.f32.mrb[0].mxu0
        %v734 = vadd.f32 0.0, %v733
        %v735 = vpop.f32.mrb[0].mxu0
        %v736 = vadd.f32 0.0, %v735
        %737 = vmatprep.mubr.f32.mxu0 %v494
        %738 = vmatmul.mubr.f32.gmra.mrb[0].mxu0 %v493
        %v739 = vpop.f32.mrb[0].mxu0
        %v740 = vadd.f32 0.0, %v739
        %v741 = vpop.f32.mrb[0].mxu0
        %v742 = vadd.f32 0.0, %v741
        %743 = vmatprep.mubr.f32.mxu0 %v496
        %744 = vmatmul.mubr.f32.gmra.mrb[0].mxu0 %v495
        %v745 = vpop.f32.mrb[0].mxu0
        %v746 = vadd.f32 0.0, %v745
        %v747 = vpop.f32.mrb[0].mxu0
        %v748 = vadd.f32 0.0, %v747
        %749 = vmatprep.mubr.f32.mxu0 %v498
        %750 = vmatmul.mubr.f32.gmra.mrb[0].mxu0 %v497
        %v751 = vpop.f32.mrb[0].mxu0
        %v752 = vadd.f32 0.0, %v751
        %v753 = vpop.f32.mrb[0].mxu0
        %v754 = vadd.f32 0.0, %v753
        %755 = vmatprep.mubr.f32.mxu0 %v500
        %756 = vmatmul.mubr.f32.gmra.mrb[0].mxu0 %v499
        %v757 = vpop.f32.mrb[0].mxu0
        %v758 = vadd.f32 0.0, %v757
        %v759 = vpop.f32.mrb[0].mxu0
        %v760 = vadd.f32 0.0, %v759
        %761 = vmatprep.mubr.f32.mxu0 %v502
        %762 = vmatmul.mubr.f32.gmra.mrb[0].mxu0 %v501
        %v763 = vpop.f32.mrb[0].mxu0
        %v764 = vadd.f32 0.0, %v763
        %v765 = vpop.f32.mrb[0].mxu0
        %v766 = vadd.f32 0.0, %v765
        %767 = vmatprep.mubr.f32.mxu0 %v504
        %768 = vmatmul.mubr.f32.gmra.mrb[0].mxu0 %v503
        %v769 = vpop.f32.mrb[0].mxu0
        %v770 = vadd.f32 0.0, %v769
        %v771 = vpop.f32.mrb[0].mxu0
        %v772 = vadd.f32 0.0, %v771
        %773 = vmatprep.mubr.f32.mxu0 %v506
        %774 = vmatmul.mubr.f32.gmra.mrb[0].mxu0 %v505
        %v775 = vpop.f32.mrb[0].mxu0
        %v776 = vadd.f32 0.0, %v775
        %v777 = vpop.f32.mrb[0].mxu0
        %v778 = vadd.f32 0.0, %v777
        %779 = vmatprep.mubr.f32.mxu0 %v508
        %780 = vmatmul.mubr.f32.gmra.mrb[0].mxu0 %v507
        %v781 = vpop.f32.mrb[0].mxu0
        %v782 = vadd.f32 0.0, %v781
        %v783 = vpop.f32.mrb[0].mxu0
        %v784 = vadd.f32 0.0, %v783
        %785 = vmatprep.mubr.f32.mxu0 %v510
        %786 = vmatmul.mubr.f32.gmra.mrb[0].mxu0 %v509
        %v787 = vpop.f32.mrb[0].mxu0
        %v788 = vadd.f32 0.0, %v787
        %v789 = vpop.f32.mrb[0].mxu0
        %v790 = vadd.f32 0.0, %v789
        %791 = vmatprep.mubr.f32.mxu0 %v512
        %792 = vmatmul.mubr.f32.gmra.mrb[0].mxu0 %v511
        %v793 = vpop.f32.mrb[0].mxu0
        %v794 = vadd.f32 0.0, %v793
        %v795 = vpop.f32.mrb[0].mxu0
        %v796 = vadd.f32 0.0, %v795
        %797 = vmatprep.mubr.f32.mxu0 %v514
        %798 = vmatmul.mubr.f32.gmra.mrb[0].mxu0 %v513
        %v799 = vpop.f32.mrb[0].mxu0
        %v800 = vadd.f32 0.0, %v799
        %v801 = vpop.f32.mrb[0].mxu0
        %v802 = vadd.f32 0.0, %v801
        %803 = vmatprep.mubr.f32.mxu0 %v516
        %804 = vmatmul.mubr.f32.gmra.mrb[0].mxu0 %v515
        %v805 = vpop.f32.mrb[0].mxu0
        %v806 = vadd.f32 0.0, %v805
        %v807 = vpop.f32.mrb[0].mxu0
        %v808 = vadd.f32 0.0, %v807
        %809 = vmatprep.mubr.f32.mxu0 %v518
        %810 = vmatmul.mubr.f32.gmra.mrb[0].mxu0 %v517
        %v811 = vpop.f32.mrb[0].mxu0
        %v812 = vadd.f32 0.0, %v811
        %v813 = vpop.f32.mrb[0].mxu0
        %v814 = vadd.f32 0.0, %v813
        %815 = vmatprep.mubr.f32.mxu0 %v520
        %816 = vmatmul.mubr.f32.gmra.mrb[0].mxu0 %v519
        %v817 = vpop.f32.mrb[0].mxu0
        %v818 = vadd.f32 0.0, %v817
        %v819 = vpop.f32.mrb[0].mxu0
        %v820 = vadd.f32 0.0, %v819
        %821 = vmatprep.mubr.f32.mxu0 %v522
        %822 = vmatmul.mubr.f32.gmra.mrb[0].mxu0 %v521
        %v823 = vpop.f32.mrb[0].mxu0
        %v824 = vadd.f32 0.0, %v823
        %v825 = vpop.f32.mrb[0].mxu0
        %v826 = vadd.f32 0.0, %v825
        %827 = vmatprep.mubr.f32.mxu0 %v524
        %828 = vmatmul.mubr.f32.gmra.mrb[0].mxu0 %v523
        %v829 = vpop.f32.mrb[0].mxu0
        %v830 = vadd.f32 0.0, %v829
        %v831 = vpop.f32.mrb[0].mxu0
        %v832 = vadd.f32 0.0, %v831
        %833 = vmatprep.mubr.f32.mxu0 %v526
        %834 = vmatmul.mubr.f32.gmra.mrb[0].mxu0 %v525
        %v835 = vpop.f32.mrb[0].mxu0
        %v836 = vadd.f32 0.0, %v835
        %v837 = vpop.f32.mrb[0].mxu0
        %v838 = vadd.f32 0.0, %v837
        %839 = vmatprep.mubr.f32.mxu0 %v528
        %840 = vmatmul.mubr.f32.gmra.mrb[0].mxu0 %v527
        %v841 = vpop.f32.mrb[0].mxu0
        %v842 = vadd.f32 0.0, %v841
        %v843 = vpop.f32.mrb[0].mxu0
        %v844 = vadd.f32 0.0, %v843
        %845 = vmatprep.mubr.f32.mxu0 %v530
        %846 = vmatmul.mubr.f32.gmra.mrb[0].mxu0 %v529
        %v847 = vpop.f32.mrb[0].mxu0
        %v848 = vadd.f32 0.0, %v847
        %v849 = vpop.f32.mrb[0].mxu0
        %v850 = vadd.f32 0.0, %v849
        %851 = vdwg.mxu0
        %v852 = vld [vmem:[#allocation2] sm:$0x3]
        %v854 = vlaneseq
        %v855 = vshrl.u32 %v854, 7
        %v856 = vsub.s32 0, %v855
        %v857 = vrot.slane %v852, %v856
        %v858 = vlaneseq
        %v859 = vshrl.u32 %v858, 7
        %v860 = vsub.s32 1, %v859
        %v861 = vrot.slane %v852, %v860
        %v864 = vmul.f32 %v662, %v857
        %v865 = vmul.f32 %v664, %v861
        %v866 = vmul.f32 %v668, %v857
        %v867 = vmul.f32 %v670, %v861
        %v868 = vmul.f32 %v674, %v857
        %v869 = vmul.f32 %v676, %v861
        %v870 = vmul.f32 %v680, %v857
        %v871 = vmul.f32 %v682, %v861
        %v872 = vmul.f32 %v686, %v857
        %v873 = vmul.f32 %v688, %v861
        %v874 = vmul.f32 %v692, %v857
        %v875 = vmul.f32 %v694, %v861
        %v876 = vmul.f32 %v698, %v857
        %v877 = vmul.f32 %v700, %v861
        %v878 = vmul.f32 %v704, %v857
        %v879 = vmul.f32 %v706, %v861
        %v880 = vmul.f32 %v710, %v857
        %v881 = vmul.f32 %v712, %v861
        %v882 = vmul.f32 %v716, %v857
        %v883 = vmul.f32 %v718, %v861
        %v884 = vmul.f32 %v722, %v857
        %v885 = vmul.f32 %v724, %v861
        %v886 = vmul.f32 %v728, %v857
        %v887 = vmul.f32 %v730, %v861
        %v888 = vmul.f32 %v734, %v857
        %v889 = vmul.f32 %v736, %v861
        %v890 = vmul.f32 %v740, %v857
        %v891 = vmul.f32 %v742, %v861
        %v892 = vmul.f32 %v746, %v857
        %v893 = vmul.f32 %v748, %v861
        %v894 = vmul.f32 %v752, %v857
        %v895 = vmul.f32 %v754, %v861
        %v896 = vmul.f32 %v758, %v857
        %v897 = vmul.f32 %v760, %v861
        %v898 = vmul.f32 %v764, %v857
        %v899 = vmul.f32 %v766, %v861
        %v900 = vmul.f32 %v770, %v857
        %v901 = vmul.f32 %v772, %v861
        %v902 = vmul.f32 %v776, %v857
        %v903 = vmul.f32 %v778, %v861
        %v904 = vmul.f32 %v782, %v857
        %v905 = vmul.f32 %v784, %v861
        %v906 = vmul.f32 %v788, %v857
        %v907 = vmul.f32 %v790, %v861
        %v908 = vmul.f32 %v794, %v857
        %v909 = vmul.f32 %v796, %v861
        %v910 = vmul.f32 %v800, %v857
        %v911 = vmul.f32 %v802, %v861
        %v912 = vmul.f32 %v806, %v857
        %v913 = vmul.f32 %v808, %v861
        %v914 = vmul.f32 %v812, %v857
        %v915 = vmul.f32 %v814, %v861
        %v916 = vmul.f32 %v818, %v857
        %v917 = vmul.f32 %v820, %v861
        %v918 = vmul.f32 %v824, %v857
        %v919 = vmul.f32 %v826, %v861
        %v920 = vmul.f32 %v830, %v857
        %v921 = vmul.f32 %v832, %v861
        %v922 = vmul.f32 %v836, %v857
        %v923 = vmul.f32 %v838, %v861
        %v924 = vmul.f32 %v842, %v857
        %v925 = vmul.f32 %v844, %v861
        %v926 = vmul.f32 %v848, %v857
        %v927 = vmul.f32 %v850, %v861
        %928 = vst [vmem:[%s228] sm:$0xff] %v864
        %929 = vst [vmem:[%s228 + $0x8] sm:$0xff] %v865
        %930 = vst [vmem:[%s228 + $0x10] sm:$0xff] %v866
        %931 = vst [vmem:[%s228 + $0x18] sm:$0xff] %v867
        %932 = vst [vmem:[%s228 + $0x20] sm:$0xff] %v868
        %933 = vst [vmem:[%s228 + $0x28] sm:$0xff] %v869
        %934 = vst [vmem:[%s228 + $0x30] sm:$0xff] %v870
        %935 = vst [vmem:[%s228 + $0x38] sm:$0xff] %v871
        %936 = vst [vmem:[%s228 + $0x40] sm:$0xff] %v872
        %937 = vst [vmem:[%s228 + $0x48] sm:$0xff] %v873
        %938 = vst [vmem:[%s228 + $0x50] sm:$0xff] %v874
        %939 = vst [vmem:[%s228 + $0x58] sm:$0xff] %v875
        %940 = vst [vmem:[%s228 + $0x60] sm:$0xff] %v876
        %941 = vst [vmem:[%s228 + $0x68] sm:$0xff] %v877
        %942 = vst [vmem:[%s228 + $0x70] sm:$0xff] %v878
        %943 = vst [vmem:[%s228 + $0x78] sm:$0xff] %v879
        %944 = vst [vmem:[%s228 + $0x80] sm:$0xff] %v880
        %945 = vst [vmem:[%s228 + $0x88] sm:$0xff] %v881
        %946 = vst [vmem:[%s228 + $0x90] sm:$0xff] %v882
        %947 = vst [vmem:[%s228 + $0x98] sm:$0xff] %v883
        %948 = vst [vmem:[%s228 + $0xa0] sm:$0xff] %v884
        %949 = vst [vmem:[%s228 + $0xa8] sm:$0xff] %v885
        %950 = vst [vmem:[%s228 + $0xb0] sm:$0xff] %v886
        %951 = vst [vmem:[%s228 + $0xb8] sm:$0xff] %v887
        %952 = vst [vmem:[%s228 + $0xc0] sm:$0xff] %v888
        %953 = vst [vmem:[%s228 + $0xc8] sm:$0xff] %v889
        %954 = vst [vmem:[%s228 + $0xd0] sm:$0xff] %v890
        %955 = vst [vmem:[%s228 + $0xd8] sm:$0xff] %v891
        %956 = vst [vmem:[%s228 + $0xe0] sm:$0xff] %v892
        %957 = vst [vmem:[%s228 + $0xe8] sm:$0xff] %v893
        %958 = vst [vmem:[%s228 + $0xf0] sm:$0xff] %v894
        %959 = vst [vmem:[%s228 + $0xf8] sm:$0xff] %v895
        %960 = vst [vmem:[%s228 + $0x100] sm:$0xff] %v896
        %961 = vst [vmem:[%s228 + $0x108] sm:$0xff] %v897
        %962 = vst [vmem:[%s228 + $0x110] sm:$0xff] %v898
        %963 = vst [vmem:[%s228 + $0x118] sm:$0xff] %v899
        %964 = vst [vmem:[%s228 + $0x120] sm:$0xff] %v900
        %965 = vst [vmem:[%s228 + $0x128] sm:$0xff] %v901
        %966 = vst [vmem:[%s228 + $0x130] sm:$0xff] %v902
        %967 = vst [vmem:[%s228 + $0x138] sm:$0xff] %v903
        %968 = vst [vmem:[%s228 + $0x140] sm:$0xff] %v904
        %969 = vst [vmem:[%s228 + $0x148] sm:$0xff] %v905
        %970 = vst [vmem:[%s228 + $0x150] sm:$0xff] %v906
        %971 = vst [vmem:[%s228 + $0x158] sm:$0xff] %v907
        %972 = vst [vmem:[%s228 + $0x160] sm:$0xff] %v908
        %973 = vst [vmem:[%s228 + $0x168] sm:$0xff] %v909
        %974 = vst [vmem:[%s228 + $0x170] sm:$0xff] %v910
        %975 = vst [vmem:[%s228 + $0x178] sm:$0xff] %v911
        %976 = vst [vmem:[%s228 + $0x180] sm:$0xff] %v912
        %977 = vst [vmem:[%s228 + $0x188] sm:$0xff] %v913
        %978 = vst [vmem:[%s228 + $0x190] sm:$0xff] %v914
        %979 = vst [vmem:[%s228 + $0x198] sm:$0xff] %v915
        %980 = vst [vmem:[%s228 + $0x1a0] sm:$0xff] %v916
        %981 = vst [vmem:[%s228 + $0x1a8] sm:$0xff] %v917
        %982 = vst [vmem:[%s228 + $0x1b0] sm:$0xff] %v918
        %983 = vst [vmem:[%s228 + $0x1b8] sm:$0xff] %v919
        %984 = vst [vmem:[%s228 + $0x1c0] sm:$0xff] %v920
        %985 = vst [vmem:[%s228 + $0x1c8] sm:$0xff] %v921
        %986 = vst [vmem:[%s228 + $0x1d0] sm:$0xff] %v922
        %987 = vst [vmem:[%s228 + $0x1d8] sm:$0xff] %v923
        %988 = vst [vmem:[%s228 + $0x1e0] sm:$0xff] %v924
        %989 = vst [vmem:[%s228 + $0x1e8] sm:$0xff] %v925
        %990 = vst [vmem:[%s228 + $0x1f0] sm:$0xff] %v926
        %991 = vst [vmem:[%s228 + $0x1f8] sm:$0xff] %v927
        %s992 = sand.u32 %s117, 1
        %s993 = scalar_lea.sflag [#allocation6], %s992
        %s994 = sand.u32 %s117, 1
        %s995 = smul.addr %s994, 512
        %s996 = scalar_lea.vmem [#allocation9], %s995
        // Predicated region
        $region45: #{tpu_custom_call.1} parent=31 // pred_check
          %p997 = pneg %p127
        $region46: #{tpu_custom_call.1} parent=31 // pred_check_branch
          %999 = sbr.rel (%p997) target = $region48
        $region47: #{tpu_custom_call.1} parent=31 // pred_region
          %s1000 = smul.u32 32, %s27
          %s1001 = smul.u32 2, %s26
          %s1003 = ssub.s32 8192, 8192
          %1004 = vsyncadd %s993, %s1003
          %s1005 = smul.addr %s1000, 4
          %s1006 = sadd.s32 %s1001, %s1005
          %s1007 = smul.addr %s1006, 128
          %s1008 = scalar_lea.hbm %s3, %s1007
          %s1009 = sshll.u32 %s996, 4
          %s1010 = int_to_ptr.vmem [resolvable:$true] %s1009
          %1015 = dma.vmem_to_hbm [thread:$0]  %s1010, 8192, %s1008, %s993, 256, 512, 16
        $region48: #{tpu_custom_call.1} parent=31 // pred_fallthru
          _
      $region32: #{tpu_custom_call.1} parent=5 // pred_fallthru
        _
      %p1016 = scmp.le.s32.totalorder 2, %s17
      // Predicated region
      $region49: #{tpu_custom_call.1} parent=5 // pred_check
        %p1017 = pneg %p1016
      $region50: #{tpu_custom_call.1} parent=5 // pred_check_branch
        %1019 = sbr.rel (%p1017) target = $region52
      $region51: #{tpu_custom_call.1} parent=5 // pred_region
        %s1020 = ssub.s32 %s17, 2
        // Predicated region
        $region53: #{tpu_custom_call.1} parent=51 // pred_check
          %p1021 = pneg %p133
        $region54: #{tpu_custom_call.1} parent=51 // pred_check_branch
          %1023 = sbr.rel (%p1021) target = $region56
        $region55: #{tpu_custom_call.1} parent=51 // pred_region
          %s1024 = sand.u32 %s118, 1
          %s1025 = scalar_lea.sflag [#allocation6], %s1024
          %s1026 = sand.u32 %s118, 1
          %s1027 = smul.addr %s1026, 512
          %s1028 = scalar_lea.vmem [#allocation9], %s1027
          %1029 = dma.done %s1025, 8192
        $region56: #{tpu_custom_call.1} parent=51 // pred_fallthru
          _
      $region52: #{tpu_custom_call.1} parent=5 // pred_fallthru
        _
    $region6: #{tpu_custom_call.1} parent=1 // loop_footer
      %s21 = sadd.s32 1, %s17
    $region7: #{tpu_custom_call.1} parent=1 // loop_footer_branch
      %16 = sbr.rel target = $region3
    $region8: #{tpu_custom_call.1} parent=1 // loop_exit
      _
    %1030 = vsyncpa [#allocation5], 1
    %s1031 = scalar_lea.sflag [#allocation5], 1
    %1032 = vsyncpa %s1031, 1
    %1033 = vsyncpa [#allocation8], 1
    %s1034 = scalar_lea.sflag [#allocation8], 1
    %1035 = vsyncpa %s1034, 1
    %1036 = vsyncpa [#allocation6], 1
    %s1037 = scalar_lea.sflag [#allocation6], 1
    %1038 = vsyncpa %s1037, 1

</llo_original>
